<compile_context>
chip_gen: v5e
topology: v5e:2x2
jax: 0.10.0
libtpu: 0.0.40
codegen_flags: <defaults>
</compile_context>

<pallas_src>
import functools

import jax
import jax.numpy as jnp
from jax.experimental import pallas as pl
from jax.experimental.pallas import tpu as pltpu

ALPHA = (0.1, 1.0)  # deterministic "parameters" from __init__ (no weights)


def _vmem_capacity_bytes():
    try:
        cap = int(pltpu.get_tpu_info().vmem_capacity_bytes)
        if cap > 0:
            return cap
    except Exception:
        pass
    return 64 * 1024 * 1024  # conservative default (v7x per-TC VMEM)


def _pick_tile_bc(bc, hw, itemsize, budget_bytes, max_tile_bc=None):
    """Largest image count per block that fits the VMEM budget.

    Per-image footprint counts 2 inputs x 2 pipeline buffers in the input
    dtype plus ~4 tile-sized f32 temporaries (d, rolled copy, diff, masked
    term) and an amortized share of the f32 partial-sum accumulators, so bf16
    inputs don't under-estimate real VMEM use (important on v7x's 64 MiB).
    """
    per_image = hw * (2 * 2 * itemsize + 4 * 4 + 2)
    max_bc = max(1, budget_bytes // per_image)
    if max_tile_bc is not None:
        max_bc = min(max_bc, max_tile_bc)
    if max_bc >= bc:
        return bc                      # single block; sublane dim == full dim
    if max_bc >= 8:
        return (max_bc // 8) * 8       # keep the sublane dim 8-aligned
    # Fewer than 8 images fit the budget (very large images): take 8 anyway so
    # the block's sublane dim stays 8-aligned.
    # TODO(synk): tile H with a 1-row halo for very large images instead.
    return min(bc, 8)


def _l1grad_kernel(x_ref, gt_ref, out_ref, acc0_ref, acc1_ref, acc2_ref, *,
                   alpha, inv_n, inv_w, inv_h, bc, tile_bc, hw, w, h,
                   acc_rows, fold, needs_row_mask, use_roll):
    step = pl.program_id(0)

    @pl.when(step == 0)
    def _init():
        acc0_ref[...] = jnp.zeros_like(acc0_ref)
        acc1_ref[...] = jnp.zeros_like(acc1_ref)
        acc2_ref[...] = jnp.zeros_like(acc2_ref)

    # One difference tensor per tile (dW(x)-dW(gt) == dW(x-gt), same for H).
    # bf16 inputs stay bf16 in HBM/VMEM and are upcast here.
    d = x_ref[...].astype(jnp.float32) - gt_ref[...].astype(jnp.float32)

    # Each image is one lane-dense row of length h*w, so the "+1" (W-neighbor)
    # and "+w" (H-neighbor) shifts are pure lane rotations on the idle XLU.
    # Positive shifts of hw-1 / hw-w are equivalent to -1 / -w.
    if use_roll:
        d_p1 = pltpu.roll(d, hw - 1, 1)   # d[i+1], wraps within the row
        d_pw = pltpu.roll(d, hw - w, 1)   # d[i+w], wraps within the row
    else:
        # Fallback for h*w not a multiple of 128 lanes.
        d_p1 = jnp.concatenate([d[:, 1:], d[:, :1]], axis=1)
        d_pw = jnp.concatenate([d[:, w:], d[:, :w]], axis=1)

    col = jax.lax.broadcasted_iota(jnp.int32, (tile_bc, hw), 1)
    mask_w = (col % w) != (w - 1)          # drop the last column of each image
    mask_h = col < (h - 1) * w             # drop the last row of each image
    if needs_row_mask:                     # ragged final block over B*C
        row = jax.lax.broadcasted_iota(jnp.int32, (tile_bc, hw), 0)
        row_ok = (row + step * tile_bc) < bc
        mask_w = jnp.logical_and(mask_w, row_ok)
        mask_h = jnp.logical_and(mask_h, row_ok)
        a0 = jnp.where(row_ok, jnp.abs(d), 0.0)
    else:
        a0 = jnp.abs(d)
    a1 = jnp.where(mask_w, jnp.abs(d_p1 - d), 0.0)
    a2 = jnp.where(mask_h, jnp.abs(d_pw - d), 0.0)

    def _fold(a):
        # Sublane-aligned static slices (multiples of 8) -> free views; the
        # adds are plain elementwise VPU ops.  No cross-lane work per step.
        if fold == 1:
            return a
        out = a[0:acc_rows, :]
        for j in range(1, fold):
            out = out + a[j * acc_rows:(j + 1) * acc_rows, :]
        return out

    acc0_ref[...] += _fold(a0)   # plain L1 term
    acc1_ref[...] += _fold(a1)   # W-gradient term
    acc2_ref[...] += _fold(a2)   # H-gradient term

    @pl.when(step == pl.num_programs(0) - 1)
    def _finalize():
        # Cross-lane reductions + scalar write happen exactly once.
        s0 = jnp.sum(acc0_ref[...])
        s1 = jnp.sum(acc1_ref[...])
        s2 = jnp.sum(acc2_ref[...])
        out_ref[0, 0] = (alpha[0] * s0 * inv_n
                         + alpha[1] * (s1 * inv_w + s2 * inv_h))


def l1_grad_loss(x, gt, *, alpha=ALPHA, vmem_budget_bytes=None, max_tile_bc=None):
    if x.shape != gt.shape or x.ndim != 4:
        raise ValueError("expected matching NCHW inputs")
    b, c, h, w = x.shape
    if h < 2 or w < 2:
        raise ValueError("H and W must both be >= 2 for the gradient terms")
    bc = b * c
    hw = h * w

    # Lane-dense layout: (B*C, H*W).  Free, contiguous reshape; every image
    # stays whole in one row so finite differences never cross a block.
    x2 = x.reshape(bc, hw)
    g2 = gt.reshape(bc, hw)

    cap = _vmem_capacity_bytes()
    if vmem_budget_bytes is None:
        # ~40% of VMEM for tiles + temporaries, capped; v5e/v6e (128 MiB) get
        # large streaming tiles, v7x (64 MiB) stays well inside its limit.
        vmem_budget_bytes = max(min(cap * 2 // 5, 48 << 20), 2 << 20)

    tile_bc = _pick_tile_bc(bc, hw, x.dtype.itemsize, vmem_budget_bytes, max_tile_bc)
    grid_n = pl.cdiv(bc, tile_bc)
    needs_row_mask = (bc % tile_bc) != 0

    # Partial-sum buffer rows: keep the per-step fold cheap (<=8 aligned adds)
    # while bounding accumulator VMEM to ~tile/8.
    if tile_bc >= 16 and tile_bc % 8 == 0:
        fold = min(8, tile_bc // 8)
        acc_rows = tile_bc // fold
    else:
        fold = 1
        acc_rows = tile_bc

    inv_n = 1.0 / float(bc * h * w)
    inv_w = 1.0 / float(bc * h * (w - 1))
    inv_h = 1.0 / float(bc * (h - 1) * w)

    kernel = functools.partial(
        _l1grad_kernel,
        alpha=tuple(float(a) for a in alpha),
        inv_n=inv_n, inv_w=inv_w, inv_h=inv_h,
        bc=bc, tile_bc=tile_bc, hw=hw, w=w, h=h,
        acc_rows=acc_rows, fold=fold,
        needs_row_mask=needs_row_mask,
        use_roll=(hw % 128 == 0),
    )

    out = pl.pallas_call(
        kernel,
        out_shape=jax.ShapeDtypeStruct((1, 1), jnp.float32),
        grid=(grid_n,),
        in_specs=[
            pl.BlockSpec((tile_bc, hw), lambda i: (i, 0)),
            pl.BlockSpec((tile_bc, hw), lambda i: (i, 0)),
        ],
        out_specs=pl.BlockSpec(memory_space=pltpu.SMEM),
        scratch_shapes=[pltpu.VMEM((acc_rows, hw), jnp.float32)] * 3,
        compiler_params=pltpu.CompilerParams(
            dimension_semantics=("arbitrary",),   # sequential accumulator axis
            vmem_limit_bytes=int(max(min(cap * 3 // 4, 100 << 20), 32 << 20)),
        ),
    )(x2, g2)
    return out[0, 0]


def _l1_grad_loss_ref(x, gt, alpha=ALPHA):
    x = x.astype(jnp.float32)
    gt = gt.astype(jnp.float32)
    l1 = jnp.mean(jnp.abs(x - gt))
    dxw = x[..., :, 1:] - x[..., :, :-1]
    dgw = gt[..., :, 1:] - gt[..., :, :-1]
    dxh = x[..., 1:, :] - x[..., :-1, :]
    dgh = gt[..., 1:, :] - gt[..., :-1, :]
    grad = jnp.mean(jnp.abs(dxw - dgw)) + jnp.mean(jnp.abs(dxh - dgh))
    return alpha[0] * l1 + alpha[1] * grad


if __name__ == "__main__":
    key = jax.random.PRNGKey(0)

    cases = [
        # (shape,            dtype,         kwargs)
        ((2, 4, 16, 16), jnp.float32, {}),                    # single-block path
        ((3, 4, 16, 16), jnp.float32, {"max_tile_bc": 8}),    # ragged last block (bc=12, tile=8)
        ((4, 8, 16, 16), jnp.float32, {"max_tile_bc": 16}),   # multi-step grid + fold>1 accumulation
        ((2, 4, 16, 16), jnp.bfloat16, {"max_tile_bc": 8}),   # bf16 stays bf16 in HBM, f32 in-kernel
    ]

    for idx, (shape, dtype, kw) in enumerate(cases):
        key, kx, kg = jax.random.split(key, 3)
        x = jax.random.normal(kx, shape, dtype=jnp.float32).astype(dtype)
        gt = jax.random.normal(kg, shape, dtype=jnp.float32).astype(dtype)
        loss = jax.block_until_ready(l1_grad_loss(x, gt, **kw))
        ref = jax.block_until_ready(_l1_grad_loss_ref(x, gt))
        assert jnp.allclose(loss, ref, rtol=1e-4, atol=1e-5), (idx, loss, ref)

    print("KERNEL_OK")
</pallas_src>

<mosaic_0001>
module attributes {stable_mosaic.version = 11 : i64} {
  func.func @_l1grad_kernel(%arg0: i32, %arg1: memref<8x256xf32, #tpu.memory_space<vmem>>, %arg2: memref<8x256xf32, #tpu.memory_space<vmem>>, %arg3: memref<1x1xf32, #tpu.memory_space<smem>>, %arg4: memref<8x256xf32, #tpu.memory_space<vmem>>, %arg5: memref<8x256xf32, #tpu.memory_space<vmem>>, %arg6: memref<8x256xf32, #tpu.memory_space<vmem>>) attributes {dimension_semantics = [#tpu.dimension_semantics<arbitrary>], iteration_bounds = array<i64: 1>, scalar_prefetch = 0 : i64, scratch_operands = 3 : i64, tpu.core_type = #tpu.core_type<tc>, window_params = [{transform_indices = @transform_0, window_bounds = array<i64: 8, 256>}, {transform_indices = @transform_1, window_bounds = array<i64: 8, 256>}, {transform_indices = @transform_2, window_bounds = array<i64: 1, 1>}]} {
    %c0_i32 = arith.constant 0 : i32
    %0 = arith.cmpi eq, %arg0, %c0_i32 : i32
    %1 = arith.extui %0 : i1 to i32
    %c0_i32_0 = arith.constant 0 : i32
    %2 = arith.cmpi ne, %1, %c0_i32_0 : i32
    scf.if %2 {
      %cst_24 = arith.constant 0.000000e+00 : f32
      %50 = vector.broadcast %cst_24 : f32 to vector<8x256xf32>
      %c0_25 = arith.constant 0 : index
      %c0_26 = arith.constant 0 : index
      %51 = vector.load %arg4[%c0_25, %c0_26] : memref<8x256xf32, #tpu.memory_space<vmem>>, vector<8x256xf32>
      tpu.vector_store %arg4[%c0_25, %c0_26], %50 {strides = array<i32>} : memref<8x256xf32, #tpu.memory_space<vmem>>, vector<8x256xf32>,
      %cst_27 = arith.constant 0.000000e+00 : f32
      %52 = vector.broadcast %cst_27 : f32 to vector<8x256xf32>
      %c0_28 = arith.constant 0 : index
      %c0_29 = arith.constant 0 : index
      %53 = vector.load %arg5[%c0_28, %c0_29] : memref<8x256xf32, #tpu.memory_space<vmem>>, vector<8x256xf32>
      tpu.vector_store %arg5[%c0_28, %c0_29], %52 {strides = array<i32>} : memref<8x256xf32, #tpu.memory_space<vmem>>, vector<8x256xf32>,
      %cst_30 = arith.constant 0.000000e+00 : f32
      %54 = vector.broadcast %cst_30 : f32 to vector<8x256xf32>
      %c0_31 = arith.constant 0 : index
      %c0_32 = arith.constant 0 : index
      %55 = vector.load %arg6[%c0_31, %c0_32] : memref<8x256xf32, #tpu.memory_space<vmem>>, vector<8x256xf32>
      tpu.vector_store %arg6[%c0_31, %c0_32], %54 {strides = array<i32>} : memref<8x256xf32, #tpu.memory_space<vmem>>, vector<8x256xf32>,
    } else {
    }
    %c0 = arith.constant 0 : index
    %c0_1 = arith.constant 0 : index
    %3 = vector.load %arg1[%c0, %c0_1] : memref<8x256xf32, #tpu.memory_space<vmem>>, vector<8x256xf32>
    %c0_2 = arith.constant 0 : index
    %c0_3 = arith.constant 0 : index
    %4 = vector.load %arg2[%c0_2, %c0_3] : memref<8x256xf32, #tpu.memory_space<vmem>>, vector<8x256xf32>
    %5 = arith.subf %3, %4 : vector<8x256xf32>
    %c255_i32 = arith.constant 255 : i32
    %6 = tpu.dynamic_rotate %5 by %c255_i32 dim 1 : vector<8x256xf32>, i32 -> vector<8x256xf32>
    %c240_i32 = arith.constant 240 : i32
    %7 = tpu.dynamic_rotate %5 by %c240_i32 dim 1 : vector<8x256xf32>, i32 -> vector<8x256xf32>
    %8 = tpu.iota {dimensions = array<i32: 1>} : vector<8x256xi32>
    %c16_i32 = arith.constant 16 : i32
    %c0_i32_4 = arith.constant 0 : i32
    %9 = arith.cmpi eq, %c16_i32, %c0_i32_4 : i32
    %c1_i32 = arith.constant 1 : i32
    %10 = arith.select %9, %c1_i32, %c16_i32 : i32
    %11 = vector.broadcast %10 : i32 to vector<8x256xi32>
    %12 = arith.remsi %8, %11 : vector<8x256xi32>
    %c0_i32_5 = arith.constant 0 : i32
    %13 = vector.broadcast %c0_i32_5 : i32 to vector<8x256xi32>
    %14 = arith.cmpi ne, %12, %13 : vector<8x256xi32>
    %c0_i32_6 = arith.constant 0 : i32
    %15 = vector.broadcast %c0_i32_6 : i32 to vector<8x256xi32>
    %16 = arith.cmpi slt, %12, %15 : vector<8x256xi32>
    %c0_i32_7 = arith.constant 0 : i32
    %17 = arith.cmpi slt, %10, %c0_i32_7 : i32
    %18 = vector.broadcast %17 : i1 to vector<8x256xi1>
    %19 = vector.broadcast %18 : vector<8x256xi1> to vector<8x256xi1>
    %20 = arith.xori %16, %19 : vector<8x256xi1>
    %21 = arith.andi %20, %14 : vector<8x256xi1>
    %22 = vector.broadcast %10 : i32 to vector<8x256xi32>
    %23 = arith.addi %12, %22 : vector<8x256xi32>
    %24 = arith.select %21, %23, %12 : vector<8x256xi1>, vector<8x256xi32>
    %c15_i32 = arith.constant 15 : i32
    %25 = vector.broadcast %c15_i32 : i32 to vector<8x256xi32>
    %26 = arith.cmpi ne, %24, %25 : vector<8x256xi32>
    %c240_i32_8 = arith.constant 240 : i32
    %27 = vector.broadcast %c240_i32_8 : i32 to vector<8x256xi32>
    %28 = arith.cmpi slt, %8, %27 : vector<8x256xi32>
    %29 = math.absf %5 : vector<8x256xf32>
    %30 = arith.subf %6, %5 : vector<8x256xf32>
    %31 = math.absf %30 : vector<8x256xf32>
    %cst = arith.constant 0.000000e+00 : f32
    %32 = vector.broadcast %cst : f32 to vector<8x256xf32>
    %33 = arith.select %26, %31, %32 : vector<8x256xi1>, vector<8x256xf32>
    %34 = arith.subf %7, %5 : vector<8x256xf32>
    %35 = math.absf %34 : vector<8x256xf32>
    %cst_9 = arith.constant 0.000000e+00 : f32
    %36 = vector.broadcast %cst_9 : f32 to vector<8x256xf32>
    %37 = arith.select %28, %35, %36 : vector<8x256xi1>, vector<8x256xf32>
    %c0_10 = arith.constant 0 : index
    %c0_11 = arith.constant 0 : index
    %38 = vector.load %arg4[%c0_10, %c0_11] : memref<8x256xf32, #tpu.memory_space<vmem>>, vector<8x256xf32>
    %39 = arith.addf %38, %29 : vector<8x256xf32>
    %c0_12 = arith.constant 0 : index
    %c0_13 = arith.constant 0 : index
    %40 = vector.load %arg4[%c0_12, %c0_13] : memref<8x256xf32, #tpu.memory_space<vmem>>, vector<8x256xf32>
    tpu.vector_store %arg4[%c0_12, %c0_13], %39 {strides = array<i32>} : memref<8x256xf32, #tpu.memory_space<vmem>>, vector<8x256xf32>,
    %c0_14 = arith.constant 0 : index
    %c0_15 = arith.constant 0 : index
    %41 = vector.load %arg5[%c0_14, %c0_15] : memref<8x256xf32, #tpu.memory_space<vmem>>, vector<8x256xf32>
    %42 = arith.addf %41, %33 : vector<8x256xf32>
    %c0_16 = arith.constant 0 : index
    %c0_17 = arith.constant 0 : index
    %43 = vector.load %arg5[%c0_16, %c0_17] : memref<8x256xf32, #tpu.memory_space<vmem>>, vector<8x256xf32>
    tpu.vector_store %arg5[%c0_16, %c0_17], %42 {strides = array<i32>} : memref<8x256xf32, #tpu.memory_space<vmem>>, vector<8x256xf32>,
    %c0_18 = arith.constant 0 : index
    %c0_19 = arith.constant 0 : index
    %44 = vector.load %arg6[%c0_18, %c0_19] : memref<8x256xf32, #tpu.memory_space<vmem>>, vector<8x256xf32>
    %45 = arith.addf %44, %37 : vector<8x256xf32>
    %c0_20 = arith.constant 0 : index
    %c0_21 = arith.constant 0 : index
    %46 = vector.load %arg6[%c0_20, %c0_21] : memref<8x256xf32, #tpu.memory_space<vmem>>, vector<8x256xf32>
    tpu.vector_store %arg6[%c0_20, %c0_21], %45 {strides = array<i32>} : memref<8x256xf32, #tpu.memory_space<vmem>>, vector<8x256xf32>,
    %c0_i32_22 = arith.constant 0 : i32
    %47 = arith.cmpi eq, %arg0, %c0_i32_22 : i32
    %48 = arith.extui %47 : i1 to i32
    %c0_i32_23 = arith.constant 0 : i32
    %49 = arith.cmpi ne, %48, %c0_i32_23 : i32
    scf.if %49 {
      %c0_24 = arith.constant 0 : index
      %c0_25 = arith.constant 0 : index
      %50 = vector.load %arg4[%c0_24, %c0_25] : memref<8x256xf32, #tpu.memory_space<vmem>>, vector<8x256xf32>
      %51 = vector.shape_cast %50 : vector<8x256xf32> to vector<1x8x256xf32>
      %cst_26 = arith.constant dense<0.000000e+00> : vector<1xf32>
      %52 = vector.multi_reduction <add>, %51, %cst_26 [1, 2] : vector<1x8x256xf32> to vector<1xf32>
      %53 = vector.shape_cast %52 : vector<1xf32> to vector<1x1x1xf32>
      %54 = vector.extract %53[0, 0, 0] : f32 from vector<1x1x1xf32>
      %c0_27 = arith.constant 0 : index
      %c0_28 = arith.constant 0 : index
      %55 = vector.load %arg5[%c0_27, %c0_28] : memref<8x256xf32, #tpu.memory_space<vmem>>, vector<8x256xf32>
      %56 = vector.shape_cast %55 : vector<8x256xf32> to vector<1x8x256xf32>
      %cst_29 = arith.constant dense<0.000000e+00> : vector<1xf32>
      %57 = vector.multi_reduction <add>, %56, %cst_29 [1, 2] : vector<1x8x256xf32> to vector<1xf32>
      %58 = vector.shape_cast %57 : vector<1xf32> to vector<1x1x1xf32>
      %59 = vector.extract %58[0, 0, 0] : f32 from vector<1x1x1xf32>
      %c0_30 = arith.constant 0 : index
      %c0_31 = arith.constant 0 : index
      %60 = vector.load %arg6[%c0_30, %c0_31] : memref<8x256xf32, #tpu.memory_space<vmem>>, vector<8x256xf32>
      %61 = vector.shape_cast %60 : vector<8x256xf32> to vector<1x8x256xf32>
      %cst_32 = arith.constant dense<0.000000e+00> : vector<1xf32>
      %62 = vector.multi_reduction <add>, %61, %cst_32 [1, 2] : vector<1x8x256xf32> to vector<1xf32>
      %63 = vector.shape_cast %62 : vector<1xf32> to vector<1x1x1xf32>
      %64 = vector.extract %63[0, 0, 0] : f32 from vector<1x1x1xf32>
      %cst_33 = arith.constant 1.000000e-01 : f32
      %65 = arith.mulf %cst_33, %54 : f32
      %cst_34 = arith.constant 4.8828125E-4 : f32
      %66 = arith.mulf %65, %cst_34 : f32
      %cst_35 = arith.constant 5.2083336E-4 : f32
      %67 = arith.mulf %59, %cst_35 : f32
      %cst_36 = arith.constant 5.2083336E-4 : f32
      %68 = arith.mulf %64, %cst_36 : f32
      %69 = arith.addf %67, %68 : f32
      %cst_37 = arith.constant 1.000000e+00 : f32
      %70 = arith.mulf %cst_37, %69 : f32
      %71 = arith.addf %66, %70 : f32
      %c0_38 = arith.constant 0 : index
      %c0_39 = arith.constant 0 : index
      %72 = memref.load %arg3[%c0_38, %c0_39] : memref<1x1xf32, #tpu.memory_space<smem>>
      memref.store %71, %arg3[%c0_38, %c0_39] : memref<1x1xf32, #tpu.memory_space<smem>>
    } else {
    }
    return
  }
  func.func @transform_0(%arg0: i32) -> (i32, i32) {
    %c0_i32 = arith.constant 0 : i32
    %c0_i32_0 = arith.constant 0 : i32
    return %arg0, %c0_i32 : i32, i32
  }
  func.func @transform_1(%arg0: i32) -> (i32, i32) {
    %c0_i32 = arith.constant 0 : i32
    %c0_i32_0 = arith.constant 0 : i32
    return %arg0, %c0_i32 : i32, i32
  }
  func.func @transform_2(%arg0: i32) -> (i32, i32) {
    %c0_i32 = arith.constant 0 : i32
    %c0_i32_0 = arith.constant 0 : i32
    %c0_i32_1 = arith.constant 0 : i32
    return %c0_i32, %c0_i32_0 : i32, i32
  }
}

</mosaic_0001>

<llo_original>
// kernel: tpu_custom_call.1
$region0: #{tpu_custom_call.1}
  #allocation0 [shape = 'u32[]', space=smem, size = 0x4, offset = 0x4, fixed_abs, tag = 'smem constant byte address 0x4 - core index']
  #allocation1 [shape = 'u32[72,128]{1,0:T(1,128)}', space=vmem, size = 0x9000, scoped, tag = 'internal scratch']
  #allocation2 [shape = 'f32[8,256]{1,0:T(8,128)}', space=vmem, size = 0x2000, scoped, tag = 'scratch operand']
  #allocation3 [shape = 'f32[8,256]{1,0:T(8,128)}', space=vmem, size = 0x2000, scoped, tag = 'scratch operand']
  #allocation4 [shape = 'f32[8,256]{1,0:T(8,128)}', space=vmem, size = 0x2000, scoped, tag = 'scratch operand']
  %s0 = inlined_call_operand.hbm [shape: f32[8,256], index: 0, kind: input, shape index: {}]
  %s1 = inlined_call_operand.hbm [shape: f32[8,256], index: 1, kind: input, shape index: {}]
  %s2 = inlined_call_operand.hbm [shape: f32[1,1], index: 2, kind: output, shape index: {}]
  %s3 = sld [smem:[#allocation0]]
  $region34: #{tpu_custom_call.1} parent=0
    _
  %s5 = ssub.s32 1, %s3
  %s6 = scalar_select 0, %s5, %s3
  $region1: #{tpu_custom_call.1} parent=0
    #allocation5 [shape = 'u8[8192]{0}', space=vmem, size = 0x2000, scoped, tag = 'input window, operand 0, single buffered']
    #allocation6 [shape = 's32[1]{0}', space=sflag, size = 0x4, scoped, tag = 'scoped memory for tpu_custom_call.1']
    #allocation7 [shape = 's32[1]{0}', space=sflag, size = 0x4, scoped, tag = 'scoped memory for tpu_custom_call.1']
    #allocation8 [shape = 'u8[8192]{0}', space=vmem, size = 0x2000, scoped, tag = 'input window, operand 1, single buffered']
    #allocation9 [shape = 's32[1]{0}', space=sflag, size = 0x4, scoped, tag = 'scoped memory for tpu_custom_call.1']
    #allocation10 [shape = 'u8[512]{0}', space=smem, size = 0x200, scoped, tag = 'output window, operand 0, single buffered']
    %7 = vsyncpa [#allocation6], 0
    %8 = vsyncpa [#allocation9], 0
    %9 = vsyncpa [#allocation7], 0
    // Predicated region
    $region2: #{tpu_custom_call.1} parent=1 // pred_check
      _
    $region3: #{tpu_custom_call.1} parent=1 // pred_check_branch
      %11 = sbr.rel (0) target = $region5
    $region4: #{tpu_custom_call.1} parent=1 // pred_region
      %13 = vsyncadd [#allocation6], 0
      %s15 = sshll.u32 %s0, 4
      %s16 = int_to_ptr.hbm [resolvable:$true] %s15
      %s17 = sshll.u32 [#allocation5], 4
      %s18 = int_to_ptr.vmem [resolvable:$true] %s17
      %20 = dma.hbm_to_vmem [thread:$0]  %s16, 256, %s18, [#allocation6]
    $region5: #{tpu_custom_call.1} parent=1 // pred_fallthru
      _
    // Predicated region
    $region6: #{tpu_custom_call.1} parent=1 // pred_check
      _
    $region7: #{tpu_custom_call.1} parent=1 // pred_check_branch
      %22 = sbr.rel (0) target = $region9
    $region8: #{tpu_custom_call.1} parent=1 // pred_region
      %24 = vsyncadd [#allocation9], 0
      %s26 = sshll.u32 %s1, 4
      %s27 = int_to_ptr.hbm [resolvable:$true] %s26
      %s28 = sshll.u32 [#allocation8], 4
      %s29 = int_to_ptr.vmem [resolvable:$true] %s28
      %31 = dma.hbm_to_vmem [thread:$0]  %s27, 256, %s29, [#allocation9]
    $region9: #{tpu_custom_call.1} parent=1 // pred_fallthru
      _
    // Predicated region
    $region10: #{tpu_custom_call.1} parent=1 // pred_check
      _
    $region11: #{tpu_custom_call.1} parent=1 // pred_check_branch
      %33 = sbr.rel (0) target = $region13
    $region12: #{tpu_custom_call.1} parent=1 // pred_region
      %35 = dma.done [#allocation6], 256
    $region13: #{tpu_custom_call.1} parent=1 // pred_fallthru
      _
    // Predicated region
    $region14: #{tpu_custom_call.1} parent=1 // pred_check
      _
    $region15: #{tpu_custom_call.1} parent=1 // pred_check_branch
      %37 = sbr.rel (0) target = $region17
    $region16: #{tpu_custom_call.1} parent=1 // pred_region
      %39 = dma.done [#allocation9], 256
    $region17: #{tpu_custom_call.1} parent=1 // pred_fallthru
      _
    %p40 = scmp.eq.s32.totalorder 0, 0
    // Predicated region
    $region18: #{tpu_custom_call.1} parent=1 // pred_check
      %p41 = pneg %p40
    $region19: #{tpu_custom_call.1} parent=1 // pred_check_branch
      %43 = sbr.rel (%p41) target = $region21
    $region20: #{tpu_custom_call.1} parent=1 // pred_region
      %44 = vst [vmem:[#allocation2] sm:$0xff] 0.0
      %45 = vst [vmem:[#allocation2 + $0x8] sm:$0xff] 0.0
      %46 = vst [vmem:[#allocation3] sm:$0xff] 0.0
      %47 = vst [vmem:[#allocation3 + $0x8] sm:$0xff] 0.0
      %48 = vst [vmem:[#allocation4] sm:$0xff] 0.0
      %49 = vst [vmem:[#allocation4 + $0x8] sm:$0xff] 0.0
    $region21: #{tpu_custom_call.1} parent=1 // pred_fallthru
      _
    %v50 = vld [vmem:[#allocation5] sm:$0xff]
    %v51 = vld [vmem:[#allocation5 + $0x8] sm:$0xff]
    %v52 = vld [vmem:[#allocation8] sm:$0xff]
    %v53 = vld [vmem:[#allocation8 + $0x8] sm:$0xff]
    %v54 = vsub.f32 %v50, %v52
    %v55 = vsub.f32 %v51, %v53
    %56 = vrot.lane.b32.xlu0 %v54, 127
    %v57 = vpop.permute.xlu0 %56
    %58 = vrot.lane.b32.xlu0 %v55, 127
    %v59 = vpop.permute.xlu0 %58
    %v60 = vlaneseq
    %v61 = vand.u32 %v60, 127
    %vm62 = vcmp.lt.s32.totalorder %v61, 127
    %v63 = vsel %vm62, %v57, %v59
    %v64 = vsel %vm62, %v59, %v57
    %65 = vrot.lane.b32.xlu0 %v54, 112
    %v66 = vpop.permute.xlu0 %65
    %67 = vrot.lane.b32.xlu0 %v55, 112
    %v68 = vpop.permute.xlu0 %67
    %vm69 = vcmp.lt.s32.totalorder %v61, 112
    %v70 = vsel %vm69, %v66, %v68
    %v71 = vsel %vm69, %v68, %v66
    %v72 = vadd.s32 %v61, 128
    %vm73 = vcmp.lt.s32.totalorder %v61, 0
    %v74 = vsub.s32 0, %v61
    %v75 = vsel %vm73, %v74, %v61
    %v76 = vshrl.u32 %v75, 4
    %v77 = vand.u32 %v75, 15
    %v78 = vsub.s32 0, %v77
    %v79 = vsel %vm73, %v78, %v77
    %vm80 = vcmp.lt.s32.totalorder %v72, 0
    %v81 = vsub.s32 0, %v72
    %v82 = vsel %vm80, %v81, %v72
    %v83 = vshrl.u32 %v82, 4
    %v84 = vand.u32 %v82, 15
    %v85 = vsub.s32 0, %v84
    %v86 = vsel %vm80, %v85, %v84
    %vm87 = vcmp.ne.s32.totalorder %v79, 0
    %vm88 = vcmp.ne.s32.totalorder %v86, 0
    %vm89 = vcmp.lt.s32.totalorder %v79, 0
    %vm90 = vcmp.lt.s32.totalorder %v86, 0
    %vm91 = vmand %vm89, %vm87
    %vm92 = vmand %vm90, %vm88
    %v93 = vadd.s32 %v79, 16
    %v94 = vadd.s32 %v86, 16
    %v95 = vsel %vm91, %v93, %v79
    %v96 = vsel %vm92, %v94, %v86
    %vm97 = vcmp.ne.s32.totalorder %v95, 15
    %vm98 = vcmp.ne.s32.totalorder %v96, 15
    %vm99 = vcmp.lt.s32.totalorder %v61, 240
    %vm100 = vcmp.lt.s32.totalorder %v72, 240
    %v101 = vand.u32 2147483647, %v54
    %v102 = vand.u32 2147483647, %v55
    %v103 = vsub.f32 %v63, %v54
    %v104 = vsub.f32 %v64, %v55
    %v105 = vand.u32 2147483647, %v103
    %v106 = vand.u32 2147483647, %v104
    %v107 = vsel %vm97, %v105, 0.0
    %v108 = vsel %vm98, %v106, 0.0
    %v109 = vsub.f32 %v70, %v54
    %v110 = vsub.f32 %v71, %v55
    %v111 = vand.u32 2147483647, %v109
    %v112 = vand.u32 2147483647, %v110
    %v113 = vsel %vm99, %v111, 0.0
    %v114 = vsel %vm100, %v112, 0.0
    %v115 = vld [vmem:[#allocation2] sm:$0xff]
    %v116 = vld [vmem:[#allocation2 + $0x8] sm:$0xff]
    %v117 = vadd.f32 %v115, %v101
    %v118 = vadd.f32 %v116, %v102
    %119 = vst [vmem:[#allocation2] sm:$0xff] %v117
    %120 = vst [vmem:[#allocation2 + $0x8] sm:$0xff] %v118
    %v121 = vld [vmem:[#allocation3] sm:$0xff]
    %v122 = vld [vmem:[#allocation3 + $0x8] sm:$0xff]
    %v123 = vadd.f32 %v121, %v107
    %v124 = vadd.f32 %v122, %v108
    %125 = vst [vmem:[#allocation3] sm:$0xff] %v123
    %126 = vst [vmem:[#allocation3 + $0x8] sm:$0xff] %v124
    %v127 = vld [vmem:[#allocation4] sm:$0xff]
    %v128 = vld [vmem:[#allocation4 + $0x8] sm:$0xff]
    %v129 = vadd.f32 %v127, %v113
    %v130 = vadd.f32 %v128, %v114
    %131 = vst [vmem:[#allocation4] sm:$0xff] %v129
    %132 = vst [vmem:[#allocation4 + $0x8] sm:$0xff] %v130
    // Predicated region
    $region22: #{tpu_custom_call.1} parent=1 // pred_check
      %p133 = pneg %p40
    $region23: #{tpu_custom_call.1} parent=1 // pred_check_branch
      %135 = sbr.rel (%p133) target = $region25
    $region24: #{tpu_custom_call.1} parent=1 // pred_region
      %v136 = vld [vmem:[#allocation2] sm:$0xff]
      %v137 = vld [vmem:[#allocation2 + $0x8] sm:$0xff]
      %v138 = vadd.f32 %v136, %v137
      %139 = vadd.xlane.f32.xlu0 %v138
      %v140 = vpop.xlane.xlu0 %139
      %v141 = vrot.slane %v140, 4
      %v142 = vadd.f32 %v140, %v141
      %v143 = vrot.slane %v142, 2
      %v144 = vadd.f32 %v142, %v143
      %v145 = vrot.slane %v144, 1
      %v146 = vadd.f32 %v144, %v145
      %s147 = vtos %v146
      %v148 = vld [vmem:[#allocation3] sm:$0xff]
      %v149 = vld [vmem:[#allocation3 + $0x8] sm:$0xff]
      %v150 = vadd.f32 %v148, %v149
      %151 = vadd.xlane.f32.xlu0 %v150
      %v152 = vpop.xlane.xlu0 %151
      %v153 = vrot.slane %v152, 4
      %v154 = vadd.f32 %v152, %v153
      %v155 = vrot.slane %v154, 2
      %v156 = vadd.f32 %v154, %v155
      %v157 = vrot.slane %v156, 1
      %v158 = vadd.f32 %v156, %v157
      %s159 = vtos %v158
      %v160 = vld [vmem:[#allocation4] sm:$0xff]
      %v161 = vld [vmem:[#allocation4 + $0x8] sm:$0xff]
      %v162 = vadd.f32 %v160, %v161
      %163 = vadd.xlane.f32.xlu0 %v162
      %v164 = vpop.xlane.xlu0 %163
      %v165 = vrot.slane %v164, 4
      %v166 = vadd.f32 %v164, %v165
      %v167 = vrot.slane %v166, 2
      %v168 = vadd.f32 %v166, %v167
      %v169 = vrot.slane %v168, 1
      %v170 = vadd.f32 %v168, %v169
      %s171 = vtos %v170
      %s172 = smul.f32 %s147, 0.1
      %s173 = smul.f32 %s172, 0.00048828125
      %s174 = smul.f32 %s159, 0.00052083336
      %s175 = smul.f32 %s171, 0.00052083336
      %s176 = sadd.f32 %s174, %s175
      %s177 = sadd.f32 %s173, %s176
      %s178 = scalar_lea.smem [#allocation10], 0
      %179 = sst [smem:[%s178]] %s177
    $region25: #{tpu_custom_call.1} parent=1 // pred_fallthru
      _
    // Predicated region
    $region26: #{tpu_custom_call.1} parent=1 // pred_check
      _
    $region27: #{tpu_custom_call.1} parent=1 // pred_check_branch
      %181 = sbr.rel (0) target = $region29
    $region28: #{tpu_custom_call.1} parent=1 // pred_region
      %183 = vsyncadd [#allocation7], 0
      %s185 = sshll.u32 %s2, 4
      %s186 = int_to_ptr.hbm [resolvable:$true] %s185
      %188 = dma.smem_to_hbm [#allocation10], 16, %s186, [#allocation7]
    $region29: #{tpu_custom_call.1} parent=1 // pred_fallthru
      _
    // Predicated region
    $region30: #{tpu_custom_call.1} parent=1 // pred_check
      _
    $region31: #{tpu_custom_call.1} parent=1 // pred_check_branch
      %190 = sbr.rel (0) target = $region33
    $region32: #{tpu_custom_call.1} parent=1 // pred_region
      %192 = dma.done [#allocation7], 16
    $region33: #{tpu_custom_call.1} parent=1 // pred_fallthru
      _
    %193 = sfence
    %194 = vsyncpa [#allocation6], 1
    %195 = vsyncpa [#allocation9], 1
    %196 = vsyncpa [#allocation7], 1

</llo_original>
